<compile_context>
chip_gen: v7x
topology: tpu7x:2x2x1
jax: 0.10.0
libtpu: 0.0.40
codegen_flags: <defaults>
</compile_context>

<pallas_src>
import functools

import jax
import jax.numpy as jnp
from jax.experimental import pallas as pl
from jax.experimental.pallas import tpu as pltpu


def _make_conv3x3_kernel(N, H, W, Cin, Co):
    """3x3 conv (pad already applied), lane-dense in/out layouts."""

    def kernel(x_ref, w_ref, b_ref, o_ref):
        # x_ref: (N, H+2, (W+2)*Cin)   -- padded input, width*Cin fused in lanes
        # w_ref: (9, W*Cin, W*Co)      -- per-tap block-diagonal kron(I_W, w_tap)
        # b_ref: (1, W*Co)             -- bias tiled across W
        # o_ref: (N*H, W*Co)           -- lane-dense output slab
        acc = jnp.zeros((N * H, W * Co), jnp.float32)
        for ky in range(3):
            for kx in range(3):
                # kx shift = contiguous lane offset of kx*Cin; ky = sublane slice.
                patch = x_ref[:, ky:ky + H, kx * Cin:(kx + W) * Cin]
                patch = patch.reshape(N * H, W * Cin)
                acc = acc + jnp.dot(
                    patch, w_ref[3 * ky + kx],
                    preferred_element_type=jnp.float32)
        o_ref[...] = acc + b_ref[...]

    return kernel


@functools.partial(jax.jit, static_argnames=("channel_equal",))
def multi_branch_forward(x_nchw, weights, biases, channel_equal=False):
    """weights: (branch, sub, Cin, 3, 3) PyTorch OIHW per branch; biases: (branch, sub).

    Returns NCHW output matching PyTorch Multi_branch.forward semantics.
    """
    branch, sub, Cin, KH, KW = weights.shape
    assert (KH, KW) == (3, 3)
    N, C, H, W = x_nchw.shape
    assert C == Cin

    # ---- fold branches in the wrapper (linearity of conv) ----
    if channel_equal:
        # concat along Cout: (3, 3, Cin, branch*sub), branch-major channel order
        w_eff = jnp.transpose(weights, (3, 4, 2, 0, 1)).reshape(3, 3, Cin, branch * sub)
        b_eff = biases.reshape(branch * sub)
        Co = branch * sub
    else:
        # sum of convs == conv with summed weights / biases
        w_eff = jnp.transpose(jnp.sum(weights, axis=0), (2, 3, 1, 0))  # (3,3,Cin,sub)
        b_eff = jnp.sum(biases, axis=0)
        Co = sub
    w_eff = w_eff.astype(jnp.float32)
    b_eff = b_eff.astype(jnp.float32)

    # ---- lane-dense operand layouts ----
    x = jnp.transpose(x_nchw, (0, 2, 3, 1)).astype(jnp.float32)      # NHWC
    x_pad = jnp.pad(x, ((0, 0), (1, 1), (1, 1), (0, 0)))             # (N,H+2,W+2,Cin)
    x_flat = x_pad.reshape(N, H + 2, (W + 2) * Cin)                  # width*Cin in lanes

    # per-tap block-diagonal weights: bigw[t] = kron(I_W, w_eff[ky,kx])
    w_taps = w_eff.reshape(9, Cin, Co)
    eye_w = jnp.eye(W, dtype=jnp.float32)
    bigw = jnp.einsum('wv,tio->twivo', eye_w, w_taps).reshape(9, W * Cin, W * Co)

    b_row = jnp.tile(b_eff, W).reshape(1, W * Co)                    # bias per lane

    kernel = _make_conv3x3_kernel(N, H, W, Cin, Co)
    out_flat = pl.pallas_call(
        kernel,
        out_shape=jax.ShapeDtypeStruct((N * H, W * Co), jnp.float32),
        grid=(1,),
        in_specs=[
            pl.BlockSpec((N, H + 2, (W + 2) * Cin), lambda i: (0, 0, 0)),
            pl.BlockSpec((9, W * Cin, W * Co), lambda i: (0, 0, 0)),
            pl.BlockSpec((1, W * Co), lambda i: (0, 0)),
        ],
        out_specs=pl.BlockSpec((N * H, W * Co), lambda i: (0, 0)),
        compiler_params=pltpu.CompilerParams(
            dimension_semantics=("arbitrary",)),
    )(x_flat, bigw, b_row)

    # (N*H, W*Co) -> (N, H, W, Co) -> NCHW
    out_nchw = jnp.transpose(out_flat.reshape(N, H, W, Co), (0, 3, 1, 2))
    return out_nchw


def _reference(x_nchw, weights, biases, channel_equal):
    branch = weights.shape[0]
    outs = []
    for i in range(branch):
        o = jax.lax.conv_general_dilated(
            x_nchw, weights[i], window_strides=(1, 1),
            padding=((1, 1), (1, 1)),
            dimension_numbers=('NCHW', 'OIHW', 'NCHW'),
            precision=jax.lax.Precision.HIGHEST)
        o = o + biases[i][None, :, None, None]
        outs.append(o)
    if channel_equal:
        return jnp.concatenate(outs, axis=1)
    return sum(outs)


if __name__ == "__main__":
    key = jax.random.PRNGKey(0)
    N, Cin, H, W = 2, 4, 16, 16
    branch = 3

    k1, k2, k3, k4, k5 = jax.random.split(key, 5)
    x = jax.random.normal(k1, (N, Cin, H, W), jnp.float32)

    # Tolerances account for default (bf16-pass) MXU precision in the kernel
    # vs. a HIGHEST-precision reference; structural bugs would be O(1) errors.
    ATOL = RTOL = 2e-2

    # --- channel_equal=False: out = sum_i conv_i(x), out_channel = 8 ---
    out_channel = 8
    w_sum = 0.1 * jax.random.normal(k2, (branch, out_channel, Cin, 3, 3), jnp.float32)
    b_sum = 0.1 * jax.random.normal(k3, (branch, out_channel), jnp.float32)
    y = jax.block_until_ready(multi_branch_forward(x, w_sum, b_sum, channel_equal=False))
    y_ref = _reference(x, w_sum, b_sum, False)
    assert y.shape == (N, out_channel, H, W)
    assert jnp.allclose(y, y_ref, atol=ATOL, rtol=RTOL), "sum-branch mismatch"

    # --- channel_equal=True: out = concat_i conv_i(x), out_channel=12, sub=4 ---
    out_channel_eq = 12
    sub = out_channel_eq // branch
    w_eq = 0.1 * jax.random.normal(k4, (branch, sub, Cin, 3, 3), jnp.float32)
    b_eq = 0.1 * jax.random.normal(k5, (branch, sub), jnp.float32)
    y2 = jax.block_until_ready(multi_branch_forward(x, w_eq, b_eq, channel_equal=True))
    y2_ref = _reference(x, w_eq, b_eq, True)
    assert y2.shape == (N, out_channel_eq, H, W)
    assert jnp.allclose(y2, y2_ref, atol=ATOL, rtol=RTOL), "concat-branch mismatch"

    print("KERNEL_OK")
</pallas_src>

<mosaic_0001>
module attributes {stable_mosaic.version = 11 : i64} {
  func.func @kernel(%arg0: i32, %arg1: memref<2x18x72xf32, #tpu.memory_space<vmem>>, %arg2: memref<9x64x128xf32, #tpu.memory_space<vmem>>, %arg3: memref<1x128xf32, #tpu.memory_space<vmem>>, %arg4: memref<32x128xf32, #tpu.memory_space<vmem>>) attributes {dimension_semantics = [#tpu.dimension_semantics<arbitrary>], iteration_bounds = array<i64: 1>, scalar_prefetch = 0 : i64, scratch_operands = 0 : i64, tpu.core_type = #tpu.core_type<tc>, window_params = [{pipeline_mode = #tpu.pipeline_mode<synchronous>, transform_indices = @transform_0, window_bounds = array<i64: 2, 18, 72>}, {pipeline_mode = #tpu.pipeline_mode<synchronous>, transform_indices = @transform_1, window_bounds = array<i64: 9, 64, 128>}, {pipeline_mode = #tpu.pipeline_mode<synchronous>, transform_indices = @transform_2, window_bounds = array<i64: 1, 128>}, {pipeline_mode = #tpu.pipeline_mode<synchronous>, transform_indices = @transform_3, window_bounds = array<i64: 32, 128>}]} {
    %cst = arith.constant 0.000000e+00 : f32
    %0 = vector.broadcast %cst : f32 to vector<32x128xf32>
    %c0 = arith.constant 0 : index
    %c0_0 = arith.constant 0 : index
    %c0_1 = arith.constant 0 : index
    %1 = vector.load %arg1[%c0, %c0_0, %c0_1] : memref<2x18x72xf32, #tpu.memory_space<vmem>>, vector<2x16x64xf32>
    %2 = vector.shape_cast %1 : vector<2x16x64xf32> to vector<32x64xf32>
    %c0_2 = arith.constant 0 : index
    %c0_3 = arith.constant 0 : index
    %c0_4 = arith.constant 0 : index
    %3 = vector.load %arg2[%c0_2, %c0_3, %c0_4] : memref<9x64x128xf32, #tpu.memory_space<vmem>>, vector<1x64x128xf32>
    %4 = vector.shape_cast %3 : vector<1x64x128xf32> to vector<64x128xf32>
    %cst_5 = arith.constant dense<0.000000e+00> : vector<32x128xf32>
    %5 = tpu.matmul %2, %4, %cst_5 {dimension_numbers = #tpu.dot_dimension_numbers<[1], [0], [0], [1], [0, 0, 1, 1], [], []>} : vector<32x64xf32>, vector<64x128xf32>, vector<32x128xf32> -> vector<32x128xf32>
    %6 = arith.addf %0, %5 : vector<32x128xf32>
    %c0_6 = arith.constant 0 : index
    %c0_7 = arith.constant 0 : index
    %c4 = arith.constant 4 : index
    %7 = vector.load %arg1[%c0_6, %c0_7, %c4] : memref<2x18x72xf32, #tpu.memory_space<vmem>>, vector<2x16x64xf32>
    %8 = vector.shape_cast %7 : vector<2x16x64xf32> to vector<32x64xf32>
    %c1 = arith.constant 1 : index
    %c0_8 = arith.constant 0 : index
    %c0_9 = arith.constant 0 : index
    %9 = vector.load %arg2[%c1, %c0_8, %c0_9] : memref<9x64x128xf32, #tpu.memory_space<vmem>>, vector<1x64x128xf32>
    %10 = vector.shape_cast %9 : vector<1x64x128xf32> to vector<64x128xf32>
    %cst_10 = arith.constant dense<0.000000e+00> : vector<32x128xf32>
    %11 = tpu.matmul %8, %10, %cst_10 {dimension_numbers = #tpu.dot_dimension_numbers<[1], [0], [0], [1], [0, 0, 1, 1], [], []>} : vector<32x64xf32>, vector<64x128xf32>, vector<32x128xf32> -> vector<32x128xf32>
    %12 = arith.addf %6, %11 : vector<32x128xf32>
    %c0_11 = arith.constant 0 : index
    %c0_12 = arith.constant 0 : index
    %c8 = arith.constant 8 : index
    %13 = vector.load %arg1[%c0_11, %c0_12, %c8] : memref<2x18x72xf32, #tpu.memory_space<vmem>>, vector<2x16x64xf32>
    %14 = vector.shape_cast %13 : vector<2x16x64xf32> to vector<32x64xf32>
    %c2 = arith.constant 2 : index
    %c0_13 = arith.constant 0 : index
    %c0_14 = arith.constant 0 : index
    %15 = vector.load %arg2[%c2, %c0_13, %c0_14] : memref<9x64x128xf32, #tpu.memory_space<vmem>>, vector<1x64x128xf32>
    %16 = vector.shape_cast %15 : vector<1x64x128xf32> to vector<64x128xf32>
    %cst_15 = arith.constant dense<0.000000e+00> : vector<32x128xf32>
    %17 = tpu.matmul %14, %16, %cst_15 {dimension_numbers = #tpu.dot_dimension_numbers<[1], [0], [0], [1], [0, 0, 1, 1], [], []>} : vector<32x64xf32>, vector<64x128xf32>, vector<32x128xf32> -> vector<32x128xf32>
    %18 = arith.addf %12, %17 : vector<32x128xf32>
    %c0_16 = arith.constant 0 : index
    %c1_17 = arith.constant 1 : index
    %c0_18 = arith.constant 0 : index
    %19 = vector.load %arg1[%c0_16, %c1_17, %c0_18] : memref<2x18x72xf32, #tpu.memory_space<vmem>>, vector<2x16x64xf32>
    %20 = vector.shape_cast %19 : vector<2x16x64xf32> to vector<32x64xf32>
    %c3 = arith.constant 3 : index
    %c0_19 = arith.constant 0 : index
    %c0_20 = arith.constant 0 : index
    %21 = vector.load %arg2[%c3, %c0_19, %c0_20] : memref<9x64x128xf32, #tpu.memory_space<vmem>>, vector<1x64x128xf32>
    %22 = vector.shape_cast %21 : vector<1x64x128xf32> to vector<64x128xf32>
    %cst_21 = arith.constant dense<0.000000e+00> : vector<32x128xf32>
    %23 = tpu.matmul %20, %22, %cst_21 {dimension_numbers = #tpu.dot_dimension_numbers<[1], [0], [0], [1], [0, 0, 1, 1], [], []>} : vector<32x64xf32>, vector<64x128xf32>, vector<32x128xf32> -> vector<32x128xf32>
    %24 = arith.addf %18, %23 : vector<32x128xf32>
    %c0_22 = arith.constant 0 : index
    %c1_23 = arith.constant 1 : index
    %c4_24 = arith.constant 4 : index
    %25 = vector.load %arg1[%c0_22, %c1_23, %c4_24] : memref<2x18x72xf32, #tpu.memory_space<vmem>>, vector<2x16x64xf32>
    %26 = vector.shape_cast %25 : vector<2x16x64xf32> to vector<32x64xf32>
    %c4_25 = arith.constant 4 : index
    %c0_26 = arith.constant 0 : index
    %c0_27 = arith.constant 0 : index
    %27 = vector.load %arg2[%c4_25, %c0_26, %c0_27] : memref<9x64x128xf32, #tpu.memory_space<vmem>>, vector<1x64x128xf32>
    %28 = vector.shape_cast %27 : vector<1x64x128xf32> to vector<64x128xf32>
    %cst_28 = arith.constant dense<0.000000e+00> : vector<32x128xf32>
    %29 = tpu.matmul %26, %28, %cst_28 {dimension_numbers = #tpu.dot_dimension_numbers<[1], [0], [0], [1], [0, 0, 1, 1], [], []>} : vector<32x64xf32>, vector<64x128xf32>, vector<32x128xf32> -> vector<32x128xf32>
    %30 = arith.addf %24, %29 : vector<32x128xf32>
    %c0_29 = arith.constant 0 : index
    %c1_30 = arith.constant 1 : index
    %c8_31 = arith.constant 8 : index
    %31 = vector.load %arg1[%c0_29, %c1_30, %c8_31] : memref<2x18x72xf32, #tpu.memory_space<vmem>>, vector<2x16x64xf32>
    %32 = vector.shape_cast %31 : vector<2x16x64xf32> to vector<32x64xf32>
    %c5 = arith.constant 5 : index
    %c0_32 = arith.constant 0 : index
    %c0_33 = arith.constant 0 : index
    %33 = vector.load %arg2[%c5, %c0_32, %c0_33] : memref<9x64x128xf32, #tpu.memory_space<vmem>>, vector<1x64x128xf32>
    %34 = vector.shape_cast %33 : vector<1x64x128xf32> to vector<64x128xf32>
    %cst_34 = arith.constant dense<0.000000e+00> : vector<32x128xf32>
    %35 = tpu.matmul %32, %34, %cst_34 {dimension_numbers = #tpu.dot_dimension_numbers<[1], [0], [0], [1], [0, 0, 1, 1], [], []>} : vector<32x64xf32>, vector<64x128xf32>, vector<32x128xf32> -> vector<32x128xf32>
    %36 = arith.addf %30, %35 : vector<32x128xf32>
    %c0_35 = arith.constant 0 : index
    %c2_36 = arith.constant 2 : index
    %c0_37 = arith.constant 0 : index
    %37 = vector.load %arg1[%c0_35, %c2_36, %c0_37] : memref<2x18x72xf32, #tpu.memory_space<vmem>>, vector<2x16x64xf32>
    %38 = vector.shape_cast %37 : vector<2x16x64xf32> to vector<32x64xf32>
    %c6 = arith.constant 6 : index
    %c0_38 = arith.constant 0 : index
    %c0_39 = arith.constant 0 : index
    %39 = vector.load %arg2[%c6, %c0_38, %c0_39] : memref<9x64x128xf32, #tpu.memory_space<vmem>>, vector<1x64x128xf32>
    %40 = vector.shape_cast %39 : vector<1x64x128xf32> to vector<64x128xf32>
    %cst_40 = arith.constant dense<0.000000e+00> : vector<32x128xf32>
    %41 = tpu.matmul %38, %40, %cst_40 {dimension_numbers = #tpu.dot_dimension_numbers<[1], [0], [0], [1], [0, 0, 1, 1], [], []>} : vector<32x64xf32>, vector<64x128xf32>, vector<32x128xf32> -> vector<32x128xf32>
    %42 = arith.addf %36, %41 : vector<32x128xf32>
    %c0_41 = arith.constant 0 : index
    %c2_42 = arith.constant 2 : index
    %c4_43 = arith.constant 4 : index
    %43 = vector.load %arg1[%c0_41, %c2_42, %c4_43] : memref<2x18x72xf32, #tpu.memory_space<vmem>>, vector<2x16x64xf32>
    %44 = vector.shape_cast %43 : vector<2x16x64xf32> to vector<32x64xf32>
    %c7 = arith.constant 7 : index
    %c0_44 = arith.constant 0 : index
    %c0_45 = arith.constant 0 : index
    %45 = vector.load %arg2[%c7, %c0_44, %c0_45] : memref<9x64x128xf32, #tpu.memory_space<vmem>>, vector<1x64x128xf32>
    %46 = vector.shape_cast %45 : vector<1x64x128xf32> to vector<64x128xf32>
    %cst_46 = arith.constant dense<0.000000e+00> : vector<32x128xf32>
    %47 = tpu.matmul %44, %46, %cst_46 {dimension_numbers = #tpu.dot_dimension_numbers<[1], [0], [0], [1], [0, 0, 1, 1], [], []>} : vector<32x64xf32>, vector<64x128xf32>, vector<32x128xf32> -> vector<32x128xf32>
    %48 = arith.addf %42, %47 : vector<32x128xf32>
    %c0_47 = arith.constant 0 : index
    %c2_48 = arith.constant 2 : index
    %c8_49 = arith.constant 8 : index
    %49 = vector.load %arg1[%c0_47, %c2_48, %c8_49] : memref<2x18x72xf32, #tpu.memory_space<vmem>>, vector<2x16x64xf32>
    %50 = vector.shape_cast %49 : vector<2x16x64xf32> to vector<32x64xf32>
    %c8_50 = arith.constant 8 : index
    %c0_51 = arith.constant 0 : index
    %c0_52 = arith.constant 0 : index
    %51 = vector.load %arg2[%c8_50, %c0_51, %c0_52] : memref<9x64x128xf32, #tpu.memory_space<vmem>>, vector<1x64x128xf32>
    %52 = vector.shape_cast %51 : vector<1x64x128xf32> to vector<64x128xf32>
    %cst_53 = arith.constant dense<0.000000e+00> : vector<32x128xf32>
    %53 = tpu.matmul %50, %52, %cst_53 {dimension_numbers = #tpu.dot_dimension_numbers<[1], [0], [0], [1], [0, 0, 1, 1], [], []>} : vector<32x64xf32>, vector<64x128xf32>, vector<32x128xf32> -> vector<32x128xf32>
    %54 = arith.addf %48, %53 : vector<32x128xf32>
    %c0_54 = arith.constant 0 : index
    %c0_55 = arith.constant 0 : index
    %55 = vector.load %arg3[%c0_54, %c0_55] : memref<1x128xf32, #tpu.memory_space<vmem>>, vector<1x128xf32>
    %56 = vector.broadcast %55 : vector<1x128xf32> to vector<32x128xf32>
    %57 = arith.addf %54, %56 : vector<32x128xf32>
    %c0_56 = arith.constant 0 : index
    %c0_57 = arith.constant 0 : index
    %58 = vector.load %arg4[%c0_56, %c0_57] : memref<32x128xf32, #tpu.memory_space<vmem>>, vector<32x128xf32>
    tpu.vector_store %arg4[%c0_56, %c0_57], %57 {strides = array<i32>} : memref<32x128xf32, #tpu.memory_space<vmem>>, vector<32x128xf32>,
    return
  }
  func.func @transform_0(%arg0: i32) -> (i32, i32, i32) {
    %c0_i32 = arith.constant 0 : i32
    %c0_i32_0 = arith.constant 0 : i32
    %c0_i32_1 = arith.constant 0 : i32
    %c0_i32_2 = arith.constant 0 : i32
    return %c0_i32, %c0_i32_0, %c0_i32_1 : i32, i32, i32
  }
  func.func @transform_1(%arg0: i32) -> (i32, i32, i32) {
    %c0_i32 = arith.constant 0 : i32
    %c0_i32_0 = arith.constant 0 : i32
    %c0_i32_1 = arith.constant 0 : i32
    %c0_i32_2 = arith.constant 0 : i32
    return %c0_i32, %c0_i32_0, %c0_i32_1 : i32, i32, i32
  }
  func.func @transform_2(%arg0: i32) -> (i32, i32) {
    %c0_i32 = arith.constant 0 : i32
    %c0_i32_0 = arith.constant 0 : i32
    %c0_i32_1 = arith.constant 0 : i32
    return %c0_i32, %c0_i32_0 : i32, i32
  }
  func.func @transform_3(%arg0: i32) -> (i32, i32) {
    %c0_i32 = arith.constant 0 : i32
    %c0_i32_0 = arith.constant 0 : i32
    %c0_i32_1 = arith.constant 0 : i32
    return %c0_i32, %c0_i32_0 : i32, i32
  }
}

</mosaic_0001>

<llo_original>
// kernel: tile.8
$region0: #{tile.8}
  #allocation0 [shape = 's32[1]{0}', space=sflag, size = 0x4, scoped, tag = 'scoped memory for tile.8']
  %s0 = inlined_call_operand.vmem [shape: f32[8], index: 0, kind: input, shape index: {}]
  %s1 = inlined_call_operand.vmem [shape: f32[16,8], index: 1, kind: output, shape index: {}]
  // Predicated region
  $region2: #{tile.8} parent=0 // pred_check
    _
  $region3: #{tile.8} parent=0 // pred_check_branch
    %3 = sbr.rel (0) target = $region5
  $region4: #{tile.8} parent=0 // pred_region
    _
  $region5: #{tile.8} parent=0 // pred_fallthru
    _
  %v4 = vld [vmem:[%s0] ss:$0 sm:$0xff]
  %5 = vst [vmem:[%s1] sm:$0xff] %v4
  %s6 = scalar_lea.vmem %s1, 8
  %7 = vst [vmem:[%s6] sm:$0xff] %v4

// kernel: tile.9
$region0: #{tile.9}
  %s0 = inlined_call_operand.vmem [shape: f32[16,8], index: 0, kind: input, shape index: {}]
  %s1 = inlined_call_operand.vmem [shape: f32[1,128], index: 1, kind: output, shape index: {}]
  $region1: #{tile.9} parent=0
    #allocation0 [shape = 'u8[4096]{0}', space=vmem, size = 0x1000, scoped, tag = 'scoped mem for output reshape']
    %v2 = vld [vmem:[%s0] sm:$0x1]
    %vm3 = vcmask 64512
    %4 = vst.msk [vmem:[#allocation0] sm:$0x1] %vm3, %v2
    %s5 = scalar_lea.vmem %s0, 15
    %v6 = vld [vmem:[%s5] sm:$0x1]
    %7 = vrot.lane.b32.xlu0 %v6, 120
    %v8 = vpop.permute.xlu0 %7
    %vm9 = vcmask 1048512
    %10 = vst.msk [vmem:[#allocation0] sm:$0x1] %vm9, %v8
    %s11 = scalar_lea.vmem %s0, 14
    %v12 = vld [vmem:[%s11] sm:$0x1]
    %13 = vrot.lane.b32.xlu0 %v12, 112
    %v14 = vpop.permute.xlu0 %13
    %vm15 = vcmask 982912
    %16 = vst.msk [vmem:[#allocation0] sm:$0x1] %vm15, %v14
    %s17 = scalar_lea.vmem %s0, 13
    %v18 = vld [vmem:[%s17] sm:$0x1]
    %19 = vrot.lane.b32.xlu0 %v18, 104
    %v20 = vpop.permute.xlu0 %19
    %vm21 = vcmask 917312
    %22 = vst.msk [vmem:[#allocation0] sm:$0x1] %vm21, %v20
    %s23 = scalar_lea.vmem %s0, 12
    %v24 = vld [vmem:[%s23] sm:$0x1]
    %25 = vrot.lane.b32.xlu0 %v24, 96
    %v26 = vpop.permute.xlu0 %25
    %vm27 = vcmask 851712
    %28 = vst.msk [vmem:[#allocation0] sm:$0x1] %vm27, %v26
    %s29 = scalar_lea.vmem %s0, 11
    %v30 = vld [vmem:[%s29] sm:$0x1]
    %31 = vrot.lane.b32.xlu0 %v30, 88
    %v32 = vpop.permute.xlu0 %31
    %vm33 = vcmask 786112
    %34 = vst.msk [vmem:[#allocation0] sm:$0x1] %vm33, %v32
    %s35 = scalar_lea.vmem %s0, 10
    %v36 = vld [vmem:[%s35] sm:$0x1]
    %37 = vrot.lane.b32.xlu0 %v36, 80
    %v38 = vpop.permute.xlu0 %37
    %vm39 = vcmask 720512
    %40 = vst.msk [vmem:[#allocation0] sm:$0x1] %vm39, %v38
    %s41 = scalar_lea.vmem %s0, 9
    %v42 = vld [vmem:[%s41] sm:$0x1]
    %43 = vrot.lane.b32.xlu0 %v42, 72
    %v44 = vpop.permute.xlu0 %43
    %vm45 = vcmask 654912
    %46 = vst.msk [vmem:[#allocation0] sm:$0x1] %vm45, %v44
    %s47 = scalar_lea.vmem %s0, 8
    %v48 = vld [vmem:[%s47] sm:$0x1]
    %49 = vrot.lane.b32.xlu0 %v48, 64
    %v50 = vpop.permute.xlu0 %49
    %vm51 = vcmask 589312
    %52 = vst.msk [vmem:[#allocation0] sm:$0x1] %vm51, %v50
    %s53 = scalar_lea.vmem %s0, 7
    %v54 = vld [vmem:[%s53] sm:$0x1]
    %55 = vrot.lane.b32.xlu0 %v54, 56
    %v56 = vpop.permute.xlu0 %55
    %vm57 = vcmask 523712
    %58 = vst.msk [vmem:[#allocation0] sm:$0x1] %vm57, %v56
    %s59 = scalar_lea.vmem %s0, 6
    %v60 = vld [vmem:[%s59] sm:$0x1]
    %61 = vrot.lane.b32.xlu0 %v60, 48
    %v62 = vpop.permute.xlu0 %61
    %vm63 = vcmask 458112
    %64 = vst.msk [vmem:[#allocation0] sm:$0x1] %vm63, %v62
    %s65 = scalar_lea.vmem %s0, 5
    %v66 = vld [vmem:[%s65] sm:$0x1]
    %67 = vrot.lane.b32.xlu0 %v66, 40
    %v68 = vpop.permute.xlu0 %67
    %vm69 = vcmask 392512
    %70 = vst.msk [vmem:[#allocation0] sm:$0x1] %vm69, %v68
    %s71 = scalar_lea.vmem %s0, 4
    %v72 = vld [vmem:[%s71] sm:$0x1]
    %73 = vrot.lane.b32.xlu0 %v72, 32
    %v74 = vpop.permute.xlu0 %73
    %vm75 = vcmask 326912
    %76 = vst.msk [vmem:[#allocation0] sm:$0x1] %vm75, %v74
    %s77 = scalar_lea.vmem %s0, 3
    %v78 = vld [vmem:[%s77] sm:$0x1]
    %79 = vrot.lane.b32.xlu0 %v78, 24
    %v80 = vpop.permute.xlu0 %79
    %vm81 = vcmask 261312
    %82 = vst.msk [vmem:[#allocation0] sm:$0x1] %vm81, %v80
    %s83 = scalar_lea.vmem %s0, 2
    %v84 = vld [vmem:[%s83] sm:$0x1]
    %85 = vrot.lane.b32.xlu0 %v84, 16
    %v86 = vpop.permute.xlu0 %85
    %vm87 = vcmask 195712
    %88 = vst.msk [vmem:[#allocation0] sm:$0x1] %vm87, %v86
    %s89 = scalar_lea.vmem %s0, 1
    %v90 = vld [vmem:[%s89] sm:$0x1]
    %91 = vrot.lane.b32.xlu0 %v90, 8
    %v92 = vpop.permute.xlu0 %91
    %vm93 = vcmask 130112
    %94 = vst.msk [vmem:[#allocation0] sm:$0x1] %vm93, %v92
    %s96 = sshllo.u32 0, 1
    %v98 = vld [vmem:[#allocation0] sm:%s96]
    %s99 = sshllo.u32 0, 1
    %100 = vst [vmem:[%s1] sm:%s99] %v98

// kernel: multi_branch_forward.1
$region0: #{multi_branch_forward.1}
  #allocation0 [shape = 'u32[]', space=smem, size = 0x4, offset = 0x4, fixed_abs, tag = 'smem constant byte address 0x4 - core index']
  #allocation1 [shape = 'u32[144,128]{1,0:T(1,128)}', space=vmem, size = 0x12000, scoped, tag = 'internal scratch']
  %s0 = inlined_call_operand.vmem [shape: f32[2,18,72], index: 0, kind: input, shape index: {}]
  %s1 = inlined_call_operand.vmem [shape: f32[9,64,128], index: 1, kind: input, shape index: {}]
  %s2 = inlined_call_operand.vmem [shape: f32[1,128], index: 2, kind: input, shape index: {}]
  %s3 = inlined_call_operand.vmem [shape: f32[32,128], index: 3, kind: output, shape index: {}]
  %s4 = sld [smem:[#allocation0]]
  $region22: #{multi_branch_forward.1} parent=0
    _
  %s6 = ssub.s32 1, %s4
  %s7 = scalar_select 0, %s6, %s4
  // Predicated region
  $region2: #{multi_branch_forward.1} parent=0 // pred_check
    _
  $region3: #{multi_branch_forward.1} parent=0 // pred_check_branch
    %9 = sbr.rel (0) target = $region5
  $region4: #{multi_branch_forward.1} parent=0 // pred_region
    _
  $region5: #{multi_branch_forward.1} parent=0 // pred_fallthru
    _
  // Predicated region
  $region6: #{multi_branch_forward.1} parent=0 // pred_check
    _
  $region7: #{multi_branch_forward.1} parent=0 // pred_check_branch
    %11 = sbr.rel (0) target = $region9
  $region8: #{multi_branch_forward.1} parent=0 // pred_region
    _
  $region9: #{multi_branch_forward.1} parent=0 // pred_fallthru
    _
  // Predicated region
  $region10: #{multi_branch_forward.1} parent=0 // pred_check
    _
  $region11: #{multi_branch_forward.1} parent=0 // pred_check_branch
    %13 = sbr.rel (0) target = $region13
  $region12: #{multi_branch_forward.1} parent=0 // pred_region
    _
  $region13: #{multi_branch_forward.1} parent=0 // pred_fallthru
    _
  %v14 = vld [vmem:[%s0] sm:$0xff]
  %v15 = vld [vmem:[%s0 + $0x8] sm:$0xff]
  %v16 = vld [vmem:[%s0 + $0x18] sm:$0xff]
  %v17 = vld [vmem:[%s0 + $0x20] sm:$0xff]
  %v18 = vld [vmem:[%s1] sm:$0xff]
  %v19 = vld [vmem:[%s1 + $0x8] sm:$0xff]
  %v20 = vld [vmem:[%s1 + $0x10] sm:$0xff]
  %v21 = vld [vmem:[%s1 + $0x18] sm:$0xff]
  %v22 = vld [vmem:[%s1 + $0x20] sm:$0xff]
  %v23 = vld [vmem:[%s1 + $0x28] sm:$0xff]
  %v24 = vld [vmem:[%s1 + $0x30] sm:$0xff]
  %v25 = vld [vmem:[%s1 + $0x38] sm:$0xff]
  %s26 = scalar_lea.vmem %s1, 64
  %v27 = vld [vmem:[%s26] sm:$0xff]
  %v28 = vld [vmem:[%s26 + $0x8] sm:$0xff]
  %v29 = vld [vmem:[%s26 + $0x10] sm:$0xff]
  %v30 = vld [vmem:[%s26 + $0x18] sm:$0xff]
  %v31 = vld [vmem:[%s26 + $0x20] sm:$0xff]
  %v32 = vld [vmem:[%s26 + $0x28] sm:$0xff]
  %v33 = vld [vmem:[%s26 + $0x30] sm:$0xff]
  %v34 = vld [vmem:[%s26 + $0x38] sm:$0xff]
  %39 = vrot.lane.b32.xlu0 %v14, 124
  %v40 = vpop.permute.xlu0 %39
  %41 = vrot.lane.b32.xlu0 %v15, 124
  %v42 = vpop.permute.xlu0 %41
  %43 = vrot.lane.b32.xlu0 %v16, 124
  %v44 = vpop.permute.xlu0 %43
  %45 = vrot.lane.b32.xlu0 %v17, 124
  %v46 = vpop.permute.xlu0 %45
  %vm47 = vcmask 523264
  %v48 = vsel %vm47, %v40, 0
  %v50 = vsel %vm47, %v42, 0
  %v52 = vsel %vm47, %v44, 0
  %v54 = vsel %vm47, %v46, 0
  %56 = vmatprep.subr.mxu0 0.0
  %57 = vmatpush1.msra.mxu0 %v27
  %58 = vmatprep.subr.mxu0 0.0
  %59 = vmatpush1.msra.mxu0 %v28
  %60 = vmatprep.subr.mxu0 0.0
  %61 = vmatpush1.msra.mxu0 %v29
  %62 = vmatprep.subr.mxu0 0.0
  %63 = vmatpush1.msra.mxu0 %v30
  %64 = vmatprep.subr.mxu0 0.0
  %65 = vmatpush1.msra.mxu0 %v31
  %66 = vmatprep.subr.mxu0 0.0
  %67 = vmatpush1.msra.mxu0 %v32
  %68 = vmatprep.subr.mxu0 0.0
  %69 = vmatpush1.msra.mxu0 %v33
  %70 = vmatprep.subr.mxu0 0.0
  %71 = vmatpush1.msra.mxu0 %v34
  %72 = vmatprep.subr.mxu0 0.0
  %73 = vmatpush1.msra.mxu0 0.0
  %74 = vmatprep.subr.mxu0 0.0
  %75 = vmatpush1.msra.mxu0 0.0
  %76 = vmatprep.subr.mxu0 0.0
  %77 = vmatpush1.msra.mxu0 0.0
  %78 = vmatprep.subr.mxu0 0.0
  %79 = vmatpush1.msra.mxu0 0.0
  %80 = vmatprep.subr.mxu0 0.0
  %81 = vmatpush1.msra.mxu0 0.0
  %82 = vmatprep.subr.mxu0 0.0
  %83 = vmatpush1.msra.mxu0 0.0
  %84 = vmatprep.subr.mxu0 0.0
  %85 = vmatpush1.msra.mxu0 0.0
  %86 = vmatprep.subr.mxu0 0.0
  %87 = vmatpush1.msra.mxu0 0.0
  %88 = vmatprep.subr.mxu0 0.0
  %89 = vmatpush1.msra.mxu0 0.0
  %90 = vmatprep.subr.mxu0 0.0
  %91 = vmatpush1.msra.mxu0 0.0
  %92 = vmatprep.subr.mxu0 0.0
  %93 = vmatpush1.msra.mxu0 0.0
  %94 = vmatprep.subr.mxu0 0.0
  %95 = vmatpush1.msra.mxu0 0.0
  %96 = vmatprep.subr.mxu0 0.0
  %97 = vmatpush1.msra.mxu0 0.0
  %98 = vmatprep.subr.mxu0 0.0
  %99 = vmatpush1.msra.mxu0 0.0
  %100 = vmatprep.subr.mxu0 0.0
  %101 = vmatpush1.msra.mxu0 0.0
  %102 = vmatprep.subr.mxu0 0.0
  %103 = vmatpush1.msra.mxu0 0.0
  %104 = vmatprep.subr.mxu0 0.0
  %105 = vmatpush1.msra.mxu0 0.0
  %106 = vmatprep.subr.mxu0 0.0
  %107 = vmatpush1.msra.mxu0 0.0
  %108 = vmatprep.subr.mxu0 0.0
  %109 = vmatpush1.msra.mxu0 0.0
  %110 = vmatprep.subr.mxu0 0.0
  %111 = vmatpush1.msra.mxu0 0.0
  %112 = vmatprep.subr.mxu0 0.0
  %113 = vmatpush1.msra.mxu0 0.0
  %114 = vmatprep.subr.mxu0 0.0
  %115 = vmatpush1.msra.mxu0 0.0
  %116 = vmatprep.subr.mxu0 0.0
  %117 = vmatpush1.msra.mxu0 0.0
  %118 = vmatprep.subr.mxu0 0.0
  %119 = vmatpush1.msra.mxu0 0.0
  %120 = vmatprep.mubr.f32.mxu0 0.0
  %121 = vmatmul.mubr.f32.gmra.mrb[0].mxu0 %v48
  %v122 = vpop.f32.mrb[0].mxu0
  %v123 = vadd.f32 0.0, %v122
  %v124 = vpop.f32.mrb[0].mxu0
  %125 = vmatprep.mubr.f32.mxu0 0.0
  %126 = vmatmul.mubr.f32.gmra.mrb[0].mxu0 %v50
  %v127 = vpop.f32.mrb[0].mxu0
  %v128 = vadd.f32 0.0, %v127
  %v129 = vpop.f32.mrb[0].mxu0
  %130 = vmatprep.mubr.f32.mxu0 0.0
  %131 = vmatmul.mubr.f32.gmra.mrb[0].mxu0 %v52
  %v132 = vpop.f32.mrb[0].mxu0
  %v133 = vadd.f32 0.0, %v132
  %v134 = vpop.f32.mrb[0].mxu0
  %135 = vmatprep.mubr.f32.mxu0 0.0
  %136 = vmatmul.mubr.f32.gmra.mrb[0].mxu0 %v54
  %v137 = vpop.f32.mrb[0].mxu0
  %v138 = vadd.f32 0.0, %v137
  %v139 = vpop.f32.mrb[0].mxu0
  %140 = vdwg.mxu0
  %v141 = vsel %vm47, %v14, 0
  %v143 = vsel %vm47, %v15, 0
  %v145 = vsel %vm47, %v16, 0
  %v147 = vsel %vm47, %v17, 0
  %149 = vmatprep.subr.mxu0 0.0
  %150 = vmatpush1.msra.mxu0 %v18
  %151 = vmatprep.subr.mxu0 0.0
  %152 = vmatpush1.msra.mxu0 %v19
  %153 = vmatprep.subr.mxu0 0.0
  %154 = vmatpush1.msra.mxu0 %v20
  %155 = vmatprep.subr.mxu0 0.0
  %156 = vmatpush1.msra.mxu0 %v21
  %157 = vmatprep.subr.mxu0 0.0
  %158 = vmatpush1.msra.mxu0 %v22
  %159 = vmatprep.subr.mxu0 0.0
  %160 = vmatpush1.msra.mxu0 %v23
  %161 = vmatprep.subr.mxu0 0.0
  %162 = vmatpush1.msra.mxu0 %v24
  %163 = vmatprep.subr.mxu0 0.0
  %164 = vmatpush1.msra.mxu0 %v25
  %165 = vmatprep.subr.mxu0 0.0
  %166 = vmatpush1.msra.mxu0 0.0
  %167 = vmatprep.subr.mxu0 0.0
  %168 = vmatpush1.msra.mxu0 0.0
  %169 = vmatprep.subr.mxu0 0.0
  %170 = vmatpush1.msra.mxu0 0.0
  %171 = vmatprep.subr.mxu0 0.0
  %172 = vmatpush1.msra.mxu0 0.0
  %173 = vmatprep.subr.mxu0 0.0
  %174 = vmatpush1.msra.mxu0 0.0
  %175 = vmatprep.subr.mxu0 0.0
  %176 = vmatpush1.msra.mxu0 0.0
  %177 = vmatprep.subr.mxu0 0.0
  %178 = vmatpush1.msra.mxu0 0.0
  %179 = vmatprep.subr.mxu0 0.0
  %180 = vmatpush1.msra.mxu0 0.0
  %181 = vmatprep.subr.mxu0 0.0
  %182 = vmatpush1.msra.mxu0 0.0
  %183 = vmatprep.subr.mxu0 0.0
  %184 = vmatpush1.msra.mxu0 0.0
  %185 = vmatprep.subr.mxu0 0.0
  %186 = vmatpush1.msra.mxu0 0.0
  %187 = vmatprep.subr.mxu0 0.0
  %188 = vmatpush1.msra.mxu0 0.0
  %189 = vmatprep.subr.mxu0 0.0
  %190 = vmatpush1.msra.mxu0 0.0
  %191 = vmatprep.subr.mxu0 0.0
  %192 = vmatpush1.msra.mxu0 0.0
  %193 = vmatprep.subr.mxu0 0.0
  %194 = vmatpush1.msra.mxu0 0.0
  %195 = vmatprep.subr.mxu0 0.0
  %196 = vmatpush1.msra.mxu0 0.0
  %197 = vmatprep.subr.mxu0 0.0
  %198 = vmatpush1.msra.mxu0 0.0
  %199 = vmatprep.subr.mxu0 0.0
  %200 = vmatpush1.msra.mxu0 0.0
  %201 = vmatprep.subr.mxu0 0.0
  %202 = vmatpush1.msra.mxu0 0.0
  %203 = vmatprep.subr.mxu0 0.0
  %204 = vmatpush1.msra.mxu0 0.0
  %205 = vmatprep.subr.mxu0 0.0
  %206 = vmatpush1.msra.mxu0 0.0
  %207 = vmatprep.subr.mxu0 0.0
  %208 = vmatpush1.msra.mxu0 0.0
  %209 = vmatprep.subr.mxu0 0.0
  %210 = vmatpush1.msra.mxu0 0.0
  %211 = vmatprep.subr.mxu0 0.0
  %212 = vmatpush1.msra.mxu0 0.0
  %213 = vmatprep.mubr.f32.mxu0 0.0
  %214 = vmatmul.mubr.f32.gmra.mrb[0].mxu0 %v141
  %v215 = vpop.f32.mrb[0].mxu0
  %v216 = vadd.f32 %v123, %v215
  %v217 = vpop.f32.mrb[0].mxu0
  %218 = vmatprep.mubr.f32.mxu0 0.0
  %219 = vmatmul.mubr.f32.gmra.mrb[0].mxu0 %v143
  %v220 = vpop.f32.mrb[0].mxu0
  %v221 = vadd.f32 %v128, %v220
  %v222 = vpop.f32.mrb[0].mxu0
  %223 = vmatprep.mubr.f32.mxu0 0.0
  %224 = vmatmul.mubr.f32.gmra.mrb[0].mxu0 %v145
  %v225 = vpop.f32.mrb[0].mxu0
  %v226 = vadd.f32 %v133, %v225
  %v227 = vpop.f32.mrb[0].mxu0
  %228 = vmatprep.mubr.f32.mxu0 0.0
  %229 = vmatmul.mubr.f32.gmra.mrb[0].mxu0 %v147
  %v230 = vpop.f32.mrb[0].mxu0
  %v231 = vadd.f32 %v138, %v230
  %v232 = vpop.f32.mrb[0].mxu0
  %233 = vdwg.mxu0
  %s234 = scalar_lea.vmem %s1, 128
  %v235 = vld [vmem:[%s234] sm:$0xff]
  %v236 = vld [vmem:[%s234 + $0x8] sm:$0xff]
  %v237 = vld [vmem:[%s234 + $0x10] sm:$0xff]
  %v238 = vld [vmem:[%s234 + $0x18] sm:$0xff]
  %v239 = vld [vmem:[%s234 + $0x20] sm:$0xff]
  %v240 = vld [vmem:[%s234 + $0x28] sm:$0xff]
  %v241 = vld [vmem:[%s234 + $0x30] sm:$0xff]
  %v242 = vld [vmem:[%s234 + $0x38] sm:$0xff]
  %243 = vrot.lane.b32.xlu0 %v14, 120
  %v244 = vpop.permute.xlu0 %243
  %245 = vrot.lane.b32.xlu0 %v15, 120
  %v246 = vpop.permute.xlu0 %245
  %247 = vrot.lane.b32.xlu0 %v16, 120
  %v248 = vpop.permute.xlu0 %247
  %249 = vrot.lane.b32.xlu0 %v17, 120
  %v250 = vpop.permute.xlu0 %249
  %v251 = vsel %vm47, %v244, 0
  %v253 = vsel %vm47, %v246, 0
  %v255 = vsel %vm47, %v248, 0
  %v257 = vsel %vm47, %v250, 0
  %259 = vmatprep.subr.mxu0 0.0
  %260 = vmatpush1.msra.mxu0 %v235
  %261 = vmatprep.subr.mxu0 0.0
  %262 = vmatpush1.msra.mxu0 %v236
  %263 = vmatprep.subr.mxu0 0.0
  %264 = vmatpush1.msra.mxu0 %v237
  %265 = vmatprep.subr.mxu0 0.0
  %266 = vmatpush1.msra.mxu0 %v238
  %267 = vmatprep.subr.mxu0 0.0
  %268 = vmatpush1.msra.mxu0 %v239
  %269 = vmatprep.subr.mxu0 0.0
  %270 = vmatpush1.msra.mxu0 %v240
  %271 = vmatprep.subr.mxu0 0.0
  %272 = vmatpush1.msra.mxu0 %v241
  %273 = vmatprep.subr.mxu0 0.0
  %274 = vmatpush1.msra.mxu0 %v242
  %275 = vmatprep.subr.mxu0 0.0
  %276 = vmatpush1.msra.mxu0 0.0
  %277 = vmatprep.subr.mxu0 0.0
  %278 = vmatpush1.msra.mxu0 0.0
  %279 = vmatprep.subr.mxu0 0.0
  %280 = vmatpush1.msra.mxu0 0.0
  %281 = vmatprep.subr.mxu0 0.0
  %282 = vmatpush1.msra.mxu0 0.0
  %283 = vmatprep.subr.mxu0 0.0
  %284 = vmatpush1.msra.mxu0 0.0
  %285 = vmatprep.subr.mxu0 0.0
  %286 = vmatpush1.msra.mxu0 0.0
  %287 = vmatprep.subr.mxu0 0.0
  %288 = vmatpush1.msra.mxu0 0.0
  %289 = vmatprep.subr.mxu0 0.0
  %290 = vmatpush1.msra.mxu0 0.0
  %291 = vmatprep.subr.mxu0 0.0
  %292 = vmatpush1.msra.mxu0 0.0
  %293 = vmatprep.subr.mxu0 0.0
  %294 = vmatpush1.msra.mxu0 0.0
  %295 = vmatprep.subr.mxu0 0.0
  %296 = vmatpush1.msra.mxu0 0.0
  %297 = vmatprep.subr.mxu0 0.0
  %298 = vmatpush1.msra.mxu0 0.0
  %299 = vmatprep.subr.mxu0 0.0
  %300 = vmatpush1.msra.mxu0 0.0
  %301 = vmatprep.subr.mxu0 0.0
  %302 = vmatpush1.msra.mxu0 0.0
  %303 = vmatprep.subr.mxu0 0.0
  %304 = vmatpush1.msra.mxu0 0.0
  %305 = vmatprep.subr.mxu0 0.0
  %306 = vmatpush1.msra.mxu0 0.0
  %307 = vmatprep.subr.mxu0 0.0
  %308 = vmatpush1.msra.mxu0 0.0
  %309 = vmatprep.subr.mxu0 0.0
  %310 = vmatpush1.msra.mxu0 0.0
  %311 = vmatprep.subr.mxu0 0.0
  %312 = vmatpush1.msra.mxu0 0.0
  %313 = vmatprep.subr.mxu0 0.0
  %314 = vmatpush1.msra.mxu0 0.0
  %315 = vmatprep.subr.mxu0 0.0
  %316 = vmatpush1.msra.mxu0 0.0
  %317 = vmatprep.subr.mxu0 0.0
  %318 = vmatpush1.msra.mxu0 0.0
  %319 = vmatprep.subr.mxu0 0.0
  %320 = vmatpush1.msra.mxu0 0.0
  %321 = vmatprep.subr.mxu0 0.0
  %322 = vmatpush1.msra.mxu0 0.0
  %323 = vmatprep.mubr.f32.mxu0 0.0
  %324 = vmatmul.mubr.f32.gmra.mrb[0].mxu0 %v251
  %v325 = vpop.f32.mrb[0].mxu0
  %v326 = vadd.f32 0.0, %v325
  %v327 = vpop.f32.mrb[0].mxu0
  %328 = vmatprep.mubr.f32.mxu0 0.0
  %329 = vmatmul.mubr.f32.gmra.mrb[0].mxu0 %v253
  %v330 = vpop.f32.mrb[0].mxu0
  %v331 = vadd.f32 0.0, %v330
  %v332 = vpop.f32.mrb[0].mxu0
  %333 = vmatprep.mubr.f32.mxu0 0.0
  %334 = vmatmul.mubr.f32.gmra.mrb[0].mxu0 %v255
  %v335 = vpop.f32.mrb[0].mxu0
  %v336 = vadd.f32 0.0, %v335
  %v337 = vpop.f32.mrb[0].mxu0
  %338 = vmatprep.mubr.f32.mxu0 0.0
  %339 = vmatmul.mubr.f32.gmra.mrb[0].mxu0 %v257
  %v340 = vpop.f32.mrb[0].mxu0
  %v341 = vadd.f32 0.0, %v340
  %v342 = vpop.f32.mrb[0].mxu0
  %343 = vdwg.mxu0
  %v344 = vadd.f32 %v216, %v326
  %v345 = vadd.f32 %v221, %v331
  %v346 = vadd.f32 %v226, %v336
  %v347 = vadd.f32 %v231, %v341
  %v348 = vld [vmem:[%s0 + $0x1] sm:$0xff]
  %v349 = vld [vmem:[%s0 + $0x9] sm:$0xff]
  %v350 = vld [vmem:[%s0 + $0x19] sm:$0xff]
  %v351 = vld [vmem:[%s0 + $0x21] sm:$0xff]
  %s352 = scalar_lea.vmem %s1, 192
  %v353 = vld [vmem:[%s352] sm:$0xff]
  %v354 = vld [vmem:[%s352 + $0x8] sm:$0xff]
  %v355 = vld [vmem:[%s352 + $0x10] sm:$0xff]
  %v356 = vld [vmem:[%s352 + $0x18] sm:$0xff]
  %v357 = vld [vmem:[%s352 + $0x20] sm:$0xff]
  %v358 = vld [vmem:[%s352 + $0x28] sm:$0xff]
  %v359 = vld [vmem:[%s352 + $0x30] sm:$0xff]
  %v360 = vld [vmem:[%s352 + $0x38] sm:$0xff]
  %v362 = vsel %vm47, %v348, 0
  %v365 = vsel %vm47, %v349, 0
  %v368 = vsel %vm47, %v350, 0
  %v371 = vsel %vm47, %v351, 0
  %373 = vmatprep.subr.mxu0 0.0
  %374 = vmatpush1.msra.mxu0 %v353
  %375 = vmatprep.subr.mxu0 0.0
  %376 = vmatpush1.msra.mxu0 %v354
  %377 = vmatprep.subr.mxu0 0.0
  %378 = vmatpush1.msra.mxu0 %v355
  %379 = vmatprep.subr.mxu0 0.0
  %380 = vmatpush1.msra.mxu0 %v356
  %381 = vmatprep.subr.mxu0 0.0
  %382 = vmatpush1.msra.mxu0 %v357
  %383 = vmatprep.subr.mxu0 0.0
  %384 = vmatpush1.msra.mxu0 %v358
  %385 = vmatprep.subr.mxu0 0.0
  %386 = vmatpush1.msra.mxu0 %v359
  %387 = vmatprep.subr.mxu0 0.0
  %388 = vmatpush1.msra.mxu0 %v360
  %389 = vmatprep.subr.mxu0 0.0
  %390 = vmatpush1.msra.mxu0 0.0
  %391 = vmatprep.subr.mxu0 0.0
  %392 = vmatpush1.msra.mxu0 0.0
  %393 = vmatprep.subr.mxu0 0.0
  %394 = vmatpush1.msra.mxu0 0.0
  %395 = vmatprep.subr.mxu0 0.0
  %396 = vmatpush1.msra.mxu0 0.0
  %397 = vmatprep.subr.mxu0 0.0
  %398 = vmatpush1.msra.mxu0 0.0
  %399 = vmatprep.subr.mxu0 0.0
  %400 = vmatpush1.msra.mxu0 0.0
  %401 = vmatprep.subr.mxu0 0.0
  %402 = vmatpush1.msra.mxu0 0.0
  %403 = vmatprep.subr.mxu0 0.0
  %404 = vmatpush1.msra.mxu0 0.0
  %405 = vmatprep.subr.mxu0 0.0
  %406 = vmatpush1.msra.mxu0 0.0
  %407 = vmatprep.subr.mxu0 0.0
  %408 = vmatpush1.msra.mxu0 0.0
  %409 = vmatprep.subr.mxu0 0.0
  %410 = vmatpush1.msra.mxu0 0.0
  %411 = vmatprep.subr.mxu0 0.0
  %412 = vmatpush1.msra.mxu0 0.0
  %413 = vmatprep.subr.mxu0 0.0
  %414 = vmatpush1.msra.mxu0 0.0
  %415 = vmatprep.subr.mxu0 0.0
  %416 = vmatpush1.msra.mxu0 0.0
  %417 = vmatprep.subr.mxu0 0.0
  %418 = vmatpush1.msra.mxu0 0.0
  %419 = vmatprep.subr.mxu0 0.0
  %420 = vmatpush1.msra.mxu0 0.0
  %421 = vmatprep.subr.mxu0 0.0
  %422 = vmatpush1.msra.mxu0 0.0
  %423 = vmatprep.subr.mxu0 0.0
  %424 = vmatpush1.msra.mxu0 0.0
  %425 = vmatprep.subr.mxu0 0.0
  %426 = vmatpush1.msra.mxu0 0.0
  %427 = vmatprep.subr.mxu0 0.0
  %428 = vmatpush1.msra.mxu0 0.0
  %429 = vmatprep.subr.mxu0 0.0
  %430 = vmatpush1.msra.mxu0 0.0
  %431 = vmatprep.subr.mxu0 0.0
  %432 = vmatpush1.msra.mxu0 0.0
  %433 = vmatprep.subr.mxu0 0.0
  %434 = vmatpush1.msra.mxu0 0.0
  %435 = vmatprep.subr.mxu0 0.0
  %436 = vmatpush1.msra.mxu0 0.0
  %437 = vmatprep.mubr.f32.mxu0 0.0
  %438 = vmatmul.mubr.f32.gmra.mrb[0].mxu0 %v362
  %v439 = vpop.f32.mrb[0].mxu0
  %v440 = vadd.f32 0.0, %v439
  %v441 = vpop.f32.mrb[0].mxu0
  %442 = vmatprep.mubr.f32.mxu0 0.0
  %443 = vmatmul.mubr.f32.gmra.mrb[0].mxu0 %v365
  %v444 = vpop.f32.mrb[0].mxu0
  %v445 = vadd.f32 0.0, %v444
  %v446 = vpop.f32.mrb[0].mxu0
  %447 = vmatprep.mubr.f32.mxu0 0.0
  %448 = vmatmul.mubr.f32.gmra.mrb[0].mxu0 %v368
  %v449 = vpop.f32.mrb[0].mxu0
  %v450 = vadd.f32 0.0, %v449
  %v451 = vpop.f32.mrb[0].mxu0
  %452 = vmatprep.mubr.f32.mxu0 0.0
  %453 = vmatmul.mubr.f32.gmra.mrb[0].mxu0 %v371
  %v454 = vpop.f32.mrb[0].mxu0
  %v455 = vadd.f32 0.0, %v454
  %v456 = vpop.f32.mrb[0].mxu0
  %457 = vdwg.mxu0
  %v458 = vadd.f32 %v344, %v440
  %v459 = vadd.f32 %v345, %v445
  %v460 = vadd.f32 %v346, %v450
  %v461 = vadd.f32 %v347, %v455
  %s462 = scalar_lea.vmem %s1, 256
  %v463 = vld [vmem:[%s462] sm:$0xff]
  %v464 = vld [vmem:[%s462 + $0x8] sm:$0xff]
  %v465 = vld [vmem:[%s462 + $0x10] sm:$0xff]
  %v466 = vld [vmem:[%s462 + $0x18] sm:$0xff]
  %v467 = vld [vmem:[%s462 + $0x20] sm:$0xff]
  %v468 = vld [vmem:[%s462 + $0x28] sm:$0xff]
  %v469 = vld [vmem:[%s462 + $0x30] sm:$0xff]
  %v470 = vld [vmem:[%s462 + $0x38] sm:$0xff]
  %471 = vrot.lane.b32.xlu0 %v348, 124
  %v472 = vpop.permute.xlu0 %471
  %473 = vrot.lane.b32.xlu0 %v349, 124
  %v474 = vpop.permute.xlu0 %473
  %475 = vrot.lane.b32.xlu0 %v350, 124
  %v476 = vpop.permute.xlu0 %475
  %477 = vrot.lane.b32.xlu0 %v351, 124
  %v478 = vpop.permute.xlu0 %477
  %v479 = vsel %vm47, %v472, 0
  %v481 = vsel %vm47, %v474, 0
  %v483 = vsel %vm47, %v476, 0
  %v485 = vsel %vm47, %v478, 0
  %487 = vmatprep.subr.mxu0 0.0
  %488 = vmatpush1.msra.mxu0 %v463
  %489 = vmatprep.subr.mxu0 0.0
  %490 = vmatpush1.msra.mxu0 %v464
  %491 = vmatprep.subr.mxu0 0.0
  %492 = vmatpush1.msra.mxu0 %v465
  %493 = vmatprep.subr.mxu0 0.0
  %494 = vmatpush1.msra.mxu0 %v466
  %495 = vmatprep.subr.mxu0 0.0
  %496 = vmatpush1.msra.mxu0 %v467
  %497 = vmatprep.subr.mxu0 0.0
  %498 = vmatpush1.msra.mxu0 %v468
  %499 = vmatprep.subr.mxu0 0.0
  %500 = vmatpush1.msra.mxu0 %v469
  %501 = vmatprep.subr.mxu0 0.0
  %502 = vmatpush1.msra.mxu0 %v470
  %503 = vmatprep.subr.mxu0 0.0
  %504 = vmatpush1.msra.mxu0 0.0
  %505 = vmatprep.subr.mxu0 0.0
  %506 = vmatpush1.msra.mxu0 0.0
  %507 = vmatprep.subr.mxu0 0.0
  %508 = vmatpush1.msra.mxu0 0.0
  %509 = vmatprep.subr.mxu0 0.0
  %510 = vmatpush1.msra.mxu0 0.0
  %511 = vmatprep.subr.mxu0 0.0
  %512 = vmatpush1.msra.mxu0 0.0
  %513 = vmatprep.subr.mxu0 0.0
  %514 = vmatpush1.msra.mxu0 0.0
  %515 = vmatprep.subr.mxu0 0.0
  %516 = vmatpush1.msra.mxu0 0.0
  %517 = vmatprep.subr.mxu0 0.0
  %518 = vmatpush1.msra.mxu0 0.0
  %519 = vmatprep.subr.mxu0 0.0
  %520 = vmatpush1.msra.mxu0 0.0
  %521 = vmatprep.subr.mxu0 0.0
  %522 = vmatpush1.msra.mxu0 0.0
  %523 = vmatprep.subr.mxu0 0.0
  %524 = vmatpush1.msra.mxu0 0.0
  %525 = vmatprep.subr.mxu0 0.0
  %526 = vmatpush1.msra.mxu0 0.0
  %527 = vmatprep.subr.mxu0 0.0
  %528 = vmatpush1.msra.mxu0 0.0
  %529 = vmatprep.subr.mxu0 0.0
  %530 = vmatpush1.msra.mxu0 0.0
  %531 = vmatprep.subr.mxu0 0.0
  %532 = vmatpush1.msra.mxu0 0.0
  %533 = vmatprep.subr.mxu0 0.0
  %534 = vmatpush1.msra.mxu0 0.0
  %535 = vmatprep.subr.mxu0 0.0
  %536 = vmatpush1.msra.mxu0 0.0
  %537 = vmatprep.subr.mxu0 0.0
  %538 = vmatpush1.msra.mxu0 0.0
  %539 = vmatprep.subr.mxu0 0.0
  %540 = vmatpush1.msra.mxu0 0.0
  %541 = vmatprep.subr.mxu0 0.0
  %542 = vmatpush1.msra.mxu0 0.0
  %543 = vmatprep.subr.mxu0 0.0
  %544 = vmatpush1.msra.mxu0 0.0
  %545 = vmatprep.subr.mxu0 0.0
  %546 = vmatpush1.msra.mxu0 0.0
  %547 = vmatprep.subr.mxu0 0.0
  %548 = vmatpush1.msra.mxu0 0.0
  %549 = vmatprep.subr.mxu0 0.0
  %550 = vmatpush1.msra.mxu0 0.0
  %551 = vmatprep.mubr.f32.mxu0 0.0
  %552 = vmatmul.mubr.f32.gmra.mrb[0].mxu0 %v479
  %v553 = vpop.f32.mrb[0].mxu0
  %v554 = vadd.f32 0.0, %v553
  %v555 = vpop.f32.mrb[0].mxu0
  %556 = vmatprep.mubr.f32.mxu0 0.0
  %557 = vmatmul.mubr.f32.gmra.mrb[0].mxu0 %v481
  %v558 = vpop.f32.mrb[0].mxu0
  %v559 = vadd.f32 0.0, %v558
  %v560 = vpop.f32.mrb[0].mxu0
  %561 = vmatprep.mubr.f32.mxu0 0.0
  %562 = vmatmul.mubr.f32.gmra.mrb[0].mxu0 %v483
  %v563 = vpop.f32.mrb[0].mxu0
  %v564 = vadd.f32 0.0, %v563
  %v565 = vpop.f32.mrb[0].mxu0
  %566 = vmatprep.mubr.f32.mxu0 0.0
  %567 = vmatmul.mubr.f32.gmra.mrb[0].mxu0 %v485
  %v568 = vpop.f32.mrb[0].mxu0
  %v569 = vadd.f32 0.0, %v568
  %v570 = vpop.f32.mrb[0].mxu0
  %571 = vdwg.mxu0
  %v572 = vadd.f32 %v458, %v554
  %v573 = vadd.f32 %v459, %v559
  %v574 = vadd.f32 %v460, %v564
  %v575 = vadd.f32 %v461, %v569
  %s576 = scalar_lea.vmem %s1, 320
  %v577 = vld [vmem:[%s576] sm:$0xff]
  %v578 = vld [vmem:[%s576 + $0x8] sm:$0xff]
  %v579 = vld [vmem:[%s576 + $0x10] sm:$0xff]
  %v580 = vld [vmem:[%s576 + $0x18] sm:$0xff]
  %v581 = vld [vmem:[%s576 + $0x20] sm:$0xff]
  %v582 = vld [vmem:[%s576 + $0x28] sm:$0xff]
  %v583 = vld [vmem:[%s576 + $0x30] sm:$0xff]
  %v584 = vld [vmem:[%s576 + $0x38] sm:$0xff]
  %585 = vrot.lane.b32.xlu0 %v348, 120
  %v586 = vpop.permute.xlu0 %585
  %587 = vrot.lane.b32.xlu0 %v349, 120
  %v588 = vpop.permute.xlu0 %587
  %589 = vrot.lane.b32.xlu0 %v350, 120
  %v590 = vpop.permute.xlu0 %589
  %591 = vrot.lane.b32.xlu0 %v351, 120
  %v592 = vpop.permute.xlu0 %591
  %v593 = vsel %vm47, %v586, 0
  %v595 = vsel %vm47, %v588, 0
  %v597 = vsel %vm47, %v590, 0
  %v599 = vsel %vm47, %v592, 0
  %601 = vmatprep.subr.mxu0 0.0
  %602 = vmatpush1.msra.mxu0 %v577
  %603 = vmatprep.subr.mxu0 0.0
  %604 = vmatpush1.msra.mxu0 %v578
  %605 = vmatprep.subr.mxu0 0.0
  %606 = vmatpush1.msra.mxu0 %v579
  %607 = vmatprep.subr.mxu0 0.0
  %608 = vmatpush1.msra.mxu0 %v580
  %609 = vmatprep.subr.mxu0 0.0
  %610 = vmatpush1.msra.mxu0 %v581
  %611 = vmatprep.subr.mxu0 0.0
  %612 = vmatpush1.msra.mxu0 %v582
  %613 = vmatprep.subr.mxu0 0.0
  %614 = vmatpush1.msra.mxu0 %v583
  %615 = vmatprep.subr.mxu0 0.0
  %616 = vmatpush1.msra.mxu0 %v584
  %617 = vmatprep.subr.mxu0 0.0
  %618 = vmatpush1.msra.mxu0 0.0
  %619 = vmatprep.subr.mxu0 0.0
  %620 = vmatpush1.msra.mxu0 0.0
  %621 = vmatprep.subr.mxu0 0.0
  %622 = vmatpush1.msra.mxu0 0.0
  %623 = vmatprep.subr.mxu0 0.0
  %624 = vmatpush1.msra.mxu0 0.0
  %625 = vmatprep.subr.mxu0 0.0
  %626 = vmatpush1.msra.mxu0 0.0
  %627 = vmatprep.subr.mxu0 0.0
  %628 = vmatpush1.msra.mxu0 0.0
  %629 = vmatprep.subr.mxu0 0.0
  %630 = vmatpush1.msra.mxu0 0.0
  %631 = vmatprep.subr.mxu0 0.0
  %632 = vmatpush1.msra.mxu0 0.0
  %633 = vmatprep.subr.mxu0 0.0
  %634 = vmatpush1.msra.mxu0 0.0
  %635 = vmatprep.subr.mxu0 0.0
  %636 = vmatpush1.msra.mxu0 0.0
  %637 = vmatprep.subr.mxu0 0.0
  %638 = vmatpush1.msra.mxu0 0.0
  %639 = vmatprep.subr.mxu0 0.0
  %640 = vmatpush1.msra.mxu0 0.0
  %641 = vmatprep.subr.mxu0 0.0
  %642 = vmatpush1.msra.mxu0 0.0
  %643 = vmatprep.subr.mxu0 0.0
  %644 = vmatpush1.msra.mxu0 0.0
  %645 = vmatprep.subr.mxu0 0.0
  %646 = vmatpush1.msra.mxu0 0.0
  %647 = vmatprep.subr.mxu0 0.0
  %648 = vmatpush1.msra.mxu0 0.0
  %649 = vmatprep.subr.mxu0 0.0
  %650 = vmatpush1.msra.mxu0 0.0
  %651 = vmatprep.subr.mxu0 0.0
  %652 = vmatpush1.msra.mxu0 0.0
  %653 = vmatprep.subr.mxu0 0.0
  %654 = vmatpush1.msra.mxu0 0.0
  %655 = vmatprep.subr.mxu0 0.0
  %656 = vmatpush1.msra.mxu0 0.0
  %657 = vmatprep.subr.mxu0 0.0
  %658 = vmatpush1.msra.mxu0 0.0
  %659 = vmatprep.subr.mxu0 0.0
  %660 = vmatpush1.msra.mxu0 0.0
  %661 = vmatprep.subr.mxu0 0.0
  %662 = vmatpush1.msra.mxu0 0.0
  %663 = vmatprep.subr.mxu0 0.0
  %664 = vmatpush1.msra.mxu0 0.0
  %665 = vmatprep.mubr.f32.mxu0 0.0
  %666 = vmatmul.mubr.f32.gmra.mrb[0].mxu0 %v593
  %v667 = vpop.f32.mrb[0].mxu0
  %v668 = vadd.f32 0.0, %v667
  %v669 = vpop.f32.mrb[0].mxu0
  %670 = vmatprep.mubr.f32.mxu0 0.0
  %671 = vmatmul.mubr.f32.gmra.mrb[0].mxu0 %v595
  %v672 = vpop.f32.mrb[0].mxu0
  %v673 = vadd.f32 0.0, %v672
  %v674 = vpop.f32.mrb[0].mxu0
  %675 = vmatprep.mubr.f32.mxu0 0.0
  %676 = vmatmul.mubr.f32.gmra.mrb[0].mxu0 %v597
  %v677 = vpop.f32.mrb[0].mxu0
  %v678 = vadd.f32 0.0, %v677
  %v679 = vpop.f32.mrb[0].mxu0
  %680 = vmatprep.mubr.f32.mxu0 0.0
  %681 = vmatmul.mubr.f32.gmra.mrb[0].mxu0 %v599
  %v682 = vpop.f32.mrb[0].mxu0
  %v683 = vadd.f32 0.0, %v682
  %v684 = vpop.f32.mrb[0].mxu0
  %685 = vdwg.mxu0
  %v686 = vadd.f32 %v572, %v668
  %v687 = vadd.f32 %v573, %v673
  %v688 = vadd.f32 %v574, %v678
  %v689 = vadd.f32 %v575, %v683
  %v690 = vld [vmem:[%s0 + $0x2] sm:$0xff]
  %v691 = vld [vmem:[%s0 + $0xa] sm:$0xff]
  %v692 = vld [vmem:[%s0 + $0x1a] sm:$0xff]
  %v693 = vld [vmem:[%s0 + $0x22] sm:$0xff]
  %s694 = scalar_lea.vmem %s1, 384
  %v695 = vld [vmem:[%s694] sm:$0xff]
  %v696 = vld [vmem:[%s694 + $0x8] sm:$0xff]
  %v697 = vld [vmem:[%s694 + $0x10] sm:$0xff]
  %v698 = vld [vmem:[%s694 + $0x18] sm:$0xff]
  %v699 = vld [vmem:[%s694 + $0x20] sm:$0xff]
  %v700 = vld [vmem:[%s694 + $0x28] sm:$0xff]
  %v701 = vld [vmem:[%s694 + $0x30] sm:$0xff]
  %v702 = vld [vmem:[%s694 + $0x38] sm:$0xff]
  %v704 = vsel %vm47, %v690, 0
  %v707 = vsel %vm47, %v691, 0
  %v710 = vsel %vm47, %v692, 0
  %v713 = vsel %vm47, %v693, 0
  %715 = vmatprep.subr.mxu0 0.0
  %716 = vmatpush1.msra.mxu0 %v695
  %717 = vmatprep.subr.mxu0 0.0
  %718 = vmatpush1.msra.mxu0 %v696
  %719 = vmatprep.subr.mxu0 0.0
  %720 = vmatpush1.msra.mxu0 %v697
  %721 = vmatprep.subr.mxu0 0.0
  %722 = vmatpush1.msra.mxu0 %v698
  %723 = vmatprep.subr.mxu0 0.0
  %724 = vmatpush1.msra.mxu0 %v699
  %725 = vmatprep.subr.mxu0 0.0
  %726 = vmatpush1.msra.mxu0 %v700
  %727 = vmatprep.subr.mxu0 0.0
  %728 = vmatpush1.msra.mxu0 %v701
  %729 = vmatprep.subr.mxu0 0.0
  %730 = vmatpush1.msra.mxu0 %v702
  %731 = vmatprep.subr.mxu0 0.0
  %732 = vmatpush1.msra.mxu0 0.0
  %733 = vmatprep.subr.mxu0 0.0
  %734 = vmatpush1.msra.mxu0 0.0
  %735 = vmatprep.subr.mxu0 0.0
  %736 = vmatpush1.msra.mxu0 0.0
  %737 = vmatprep.subr.mxu0 0.0
  %738 = vmatpush1.msra.mxu0 0.0
  %739 = vmatprep.subr.mxu0 0.0
  %740 = vmatpush1.msra.mxu0 0.0
  %741 = vmatprep.subr.mxu0 0.0
  %742 = vmatpush1.msra.mxu0 0.0
  %743 = vmatprep.subr.mxu0 0.0
  %744 = vmatpush1.msra.mxu0 0.0
  %745 = vmatprep.subr.mxu0 0.0
  %746 = vmatpush1.msra.mxu0 0.0
  %747 = vmatprep.subr.mxu0 0.0
  %748 = vmatpush1.msra.mxu0 0.0
  %749 = vmatprep.subr.mxu0 0.0
  %750 = vmatpush1.msra.mxu0 0.0
  %751 = vmatprep.subr.mxu0 0.0
  %752 = vmatpush1.msra.mxu0 0.0
  %753 = vmatprep.subr.mxu0 0.0
  %754 = vmatpush1.msra.mxu0 0.0
  %755 = vmatprep.subr.mxu0 0.0
  %756 = vmatpush1.msra.mxu0 0.0
  %757 = vmatprep.subr.mxu0 0.0
  %758 = vmatpush1.msra.mxu0 0.0
  %759 = vmatprep.subr.mxu0 0.0
  %760 = vmatpush1.msra.mxu0 0.0
  %761 = vmatprep.subr.mxu0 0.0
  %762 = vmatpush1.msra.mxu0 0.0
  %763 = vmatprep.subr.mxu0 0.0
  %764 = vmatpush1.msra.mxu0 0.0
  %765 = vmatprep.subr.mxu0 0.0
  %766 = vmatpush1.msra.mxu0 0.0
  %767 = vmatprep.subr.mxu0 0.0
  %768 = vmatpush1.msra.mxu0 0.0
  %769 = vmatprep.subr.mxu0 0.0
  %770 = vmatpush1.msra.mxu0 0.0
  %771 = vmatprep.subr.mxu0 0.0
  %772 = vmatpush1.msra.mxu0 0.0
  %773 = vmatprep.subr.mxu0 0.0
  %774 = vmatpush1.msra.mxu0 0.0
  %775 = vmatprep.subr.mxu0 0.0
  %776 = vmatpush1.msra.mxu0 0.0
  %777 = vmatprep.subr.mxu0 0.0
  %778 = vmatpush1.msra.mxu0 0.0
  %779 = vmatprep.mubr.f32.mxu0 0.0
  %780 = vmatmul.mubr.f32.gmra.mrb[0].mxu0 %v704
  %v781 = vpop.f32.mrb[0].mxu0
  %v782 = vadd.f32 0.0, %v781
  %v783 = vpop.f32.mrb[0].mxu0
  %784 = vmatprep.mubr.f32.mxu0 0.0
  %785 = vmatmul.mubr.f32.gmra.mrb[0].mxu0 %v707
  %v786 = vpop.f32.mrb[0].mxu0
  %v787 = vadd.f32 0.0, %v786
  %v788 = vpop.f32.mrb[0].mxu0
  %789 = vmatprep.mubr.f32.mxu0 0.0
  %790 = vmatmul.mubr.f32.gmra.mrb[0].mxu0 %v710
  %v791 = vpop.f32.mrb[0].mxu0
  %v792 = vadd.f32 0.0, %v791
  %v793 = vpop.f32.mrb[0].mxu0
  %794 = vmatprep.mubr.f32.mxu0 0.0
  %795 = vmatmul.mubr.f32.gmra.mrb[0].mxu0 %v713
  %v796 = vpop.f32.mrb[0].mxu0
  %v797 = vadd.f32 0.0, %v796
  %v798 = vpop.f32.mrb[0].mxu0
  %799 = vdwg.mxu0
  %v800 = vadd.f32 %v686, %v782
  %v801 = vadd.f32 %v687, %v787
  %v802 = vadd.f32 %v688, %v792
  %v803 = vadd.f32 %v689, %v797
  %s804 = scalar_lea.vmem %s1, 448
  %v805 = vld [vmem:[%s804] sm:$0xff]
  %v806 = vld [vmem:[%s804 + $0x8] sm:$0xff]
  %v807 = vld [vmem:[%s804 + $0x10] sm:$0xff]
  %v808 = vld [vmem:[%s804 + $0x18] sm:$0xff]
  %v809 = vld [vmem:[%s804 + $0x20] sm:$0xff]
  %v810 = vld [vmem:[%s804 + $0x28] sm:$0xff]
  %v811 = vld [vmem:[%s804 + $0x30] sm:$0xff]
  %v812 = vld [vmem:[%s804 + $0x38] sm:$0xff]
  %813 = vrot.lane.b32.xlu0 %v690, 124
  %v814 = vpop.permute.xlu0 %813
  %815 = vrot.lane.b32.xlu0 %v691, 124
  %v816 = vpop.permute.xlu0 %815
  %817 = vrot.lane.b32.xlu0 %v692, 124
  %v818 = vpop.permute.xlu0 %817
  %819 = vrot.lane.b32.xlu0 %v693, 124
  %v820 = vpop.permute.xlu0 %819
  %v821 = vsel %vm47, %v814, 0
  %v823 = vsel %vm47, %v816, 0
  %v825 = vsel %vm47, %v818, 0
  %v827 = vsel %vm47, %v820, 0
  %829 = vmatprep.subr.mxu0 0.0
  %830 = vmatpush1.msra.mxu0 %v805
  %831 = vmatprep.subr.mxu0 0.0
  %832 = vmatpush1.msra.mxu0 %v806
  %833 = vmatprep.subr.mxu0 0.0
  %834 = vmatpush1.msra.mxu0 %v807
  %835 = vmatprep.subr.mxu0 0.0
  %836 = vmatpush1.msra.mxu0 %v808
  %837 = vmatprep.subr.mxu0 0.0
  %838 = vmatpush1.msra.mxu0 %v809
  %839 = vmatprep.subr.mxu0 0.0
  %840 = vmatpush1.msra.mxu0 %v810
  %841 = vmatprep.subr.mxu0 0.0
  %842 = vmatpush1.msra.mxu0 %v811
  %843 = vmatprep.subr.mxu0 0.0
  %844 = vmatpush1.msra.mxu0 %v812
  %845 = vmatprep.subr.mxu0 0.0
  %846 = vmatpush1.msra.mxu0 0.0
  %847 = vmatprep.subr.mxu0 0.0
  %848 = vmatpush1.msra.mxu0 0.0
  %849 = vmatprep.subr.mxu0 0.0
  %850 = vmatpush1.msra.mxu0 0.0
  %851 = vmatprep.subr.mxu0 0.0
  %852 = vmatpush1.msra.mxu0 0.0
  %853 = vmatprep.subr.mxu0 0.0
  %854 = vmatpush1.msra.mxu0 0.0
  %855 = vmatprep.subr.mxu0 0.0
  %856 = vmatpush1.msra.mxu0 0.0
  %857 = vmatprep.subr.mxu0 0.0
  %858 = vmatpush1.msra.mxu0 0.0
  %859 = vmatprep.subr.mxu0 0.0
  %860 = vmatpush1.msra.mxu0 0.0
  %861 = vmatprep.subr.mxu0 0.0
  %862 = vmatpush1.msra.mxu0 0.0
  %863 = vmatprep.subr.mxu0 0.0
  %864 = vmatpush1.msra.mxu0 0.0
  %865 = vmatprep.subr.mxu0 0.0
  %866 = vmatpush1.msra.mxu0 0.0
  %867 = vmatprep.subr.mxu0 0.0
  %868 = vmatpush1.msra.mxu0 0.0
  %869 = vmatprep.subr.mxu0 0.0
  %870 = vmatpush1.msra.mxu0 0.0
  %871 = vmatprep.subr.mxu0 0.0
  %872 = vmatpush1.msra.mxu0 0.0
  %873 = vmatprep.subr.mxu0 0.0
  %874 = vmatpush1.msra.mxu0 0.0
  %875 = vmatprep.subr.mxu0 0.0
  %876 = vmatpush1.msra.mxu0 0.0
  %877 = vmatprep.subr.mxu0 0.0
  %878 = vmatpush1.msra.mxu0 0.0
  %879 = vmatprep.subr.mxu0 0.0
  %880 = vmatpush1.msra.mxu0 0.0
  %881 = vmatprep.subr.mxu0 0.0
  %882 = vmatpush1.msra.mxu0 0.0
  %883 = vmatprep.subr.mxu0 0.0
  %884 = vmatpush1.msra.mxu0 0.0
  %885 = vmatprep.subr.mxu0 0.0
  %886 = vmatpush1.msra.mxu0 0.0
  %887 = vmatprep.subr.mxu0 0.0
  %888 = vmatpush1.msra.mxu0 0.0
  %889 = vmatprep.subr.mxu0 0.0
  %890 = vmatpush1.msra.mxu0 0.0
  %891 = vmatprep.subr.mxu0 0.0
  %892 = vmatpush1.msra.mxu0 0.0
  %893 = vmatprep.mubr.f32.mxu0 0.0
  %894 = vmatmul.mubr.f32.gmra.mrb[0].mxu0 %v821
  %v895 = vpop.f32.mrb[0].mxu0
  %v896 = vadd.f32 0.0, %v895
  %v897 = vpop.f32.mrb[0].mxu0
  %898 = vmatprep.mubr.f32.mxu0 0.0
  %899 = vmatmul.mubr.f32.gmra.mrb[0].mxu0 %v823
  %v900 = vpop.f32.mrb[0].mxu0
  %v901 = vadd.f32 0.0, %v900
  %v902 = vpop.f32.mrb[0].mxu0
  %903 = vmatprep.mubr.f32.mxu0 0.0
  %904 = vmatmul.mubr.f32.gmra.mrb[0].mxu0 %v825
  %v905 = vpop.f32.mrb[0].mxu0
  %v906 = vadd.f32 0.0, %v905
  %v907 = vpop.f32.mrb[0].mxu0
  %908 = vmatprep.mubr.f32.mxu0 0.0
  %909 = vmatmul.mubr.f32.gmra.mrb[0].mxu0 %v827
  %v910 = vpop.f32.mrb[0].mxu0
  %v911 = vadd.f32 0.0, %v910
  %v912 = vpop.f32.mrb[0].mxu0
  %913 = vdwg.mxu0
  %v914 = vadd.f32 %v800, %v896
  %v915 = vadd.f32 %v801, %v901
  %v916 = vadd.f32 %v802, %v906
  %v917 = vadd.f32 %v803, %v911
  %s918 = scalar_lea.vmem %s1, 512
  %v919 = vld [vmem:[%s918] sm:$0xff]
  %v920 = vld [vmem:[%s918 + $0x8] sm:$0xff]
  %v921 = vld [vmem:[%s918 + $0x10] sm:$0xff]
  %v922 = vld [vmem:[%s918 + $0x18] sm:$0xff]
  %v923 = vld [vmem:[%s918 + $0x20] sm:$0xff]
  %v924 = vld [vmem:[%s918 + $0x28] sm:$0xff]
  %v925 = vld [vmem:[%s918 + $0x30] sm:$0xff]
  %v926 = vld [vmem:[%s918 + $0x38] sm:$0xff]
  %927 = vrot.lane.b32.xlu0 %v690, 120
  %v928 = vpop.permute.xlu0 %927
  %929 = vrot.lane.b32.xlu0 %v691, 120
  %v930 = vpop.permute.xlu0 %929
  %931 = vrot.lane.b32.xlu0 %v692, 120
  %v932 = vpop.permute.xlu0 %931
  %933 = vrot.lane.b32.xlu0 %v693, 120
  %v934 = vpop.permute.xlu0 %933
  %v935 = vsel %vm47, %v928, 0
  %v937 = vsel %vm47, %v930, 0
  %v939 = vsel %vm47, %v932, 0
  %v941 = vsel %vm47, %v934, 0
  %943 = vmatprep.subr.mxu0 0.0
  %944 = vmatpush1.msra.mxu0 %v919
  %945 = vmatprep.subr.mxu0 0.0
  %946 = vmatpush1.msra.mxu0 %v920
  %947 = vmatprep.subr.mxu0 0.0
  %948 = vmatpush1.msra.mxu0 %v921
  %949 = vmatprep.subr.mxu0 0.0
  %950 = vmatpush1.msra.mxu0 %v922
  %951 = vmatprep.subr.mxu0 0.0
  %952 = vmatpush1.msra.mxu0 %v923
  %953 = vmatprep.subr.mxu0 0.0
  %954 = vmatpush1.msra.mxu0 %v924
  %955 = vmatprep.subr.mxu0 0.0
  %956 = vmatpush1.msra.mxu0 %v925
  %957 = vmatprep.subr.mxu0 0.0
  %958 = vmatpush1.msra.mxu0 %v926
  %959 = vmatprep.subr.mxu0 0.0
  %960 = vmatpush1.msra.mxu0 0.0
  %961 = vmatprep.subr.mxu0 0.0
  %962 = vmatpush1.msra.mxu0 0.0
  %963 = vmatprep.subr.mxu0 0.0
  %964 = vmatpush1.msra.mxu0 0.0
  %965 = vmatprep.subr.mxu0 0.0
  %966 = vmatpush1.msra.mxu0 0.0
  %967 = vmatprep.subr.mxu0 0.0
  %968 = vmatpush1.msra.mxu0 0.0
  %969 = vmatprep.subr.mxu0 0.0
  %970 = vmatpush1.msra.mxu0 0.0
  %971 = vmatprep.subr.mxu0 0.0
  %972 = vmatpush1.msra.mxu0 0.0
  %973 = vmatprep.subr.mxu0 0.0
  %974 = vmatpush1.msra.mxu0 0.0
  %975 = vmatprep.subr.mxu0 0.0
  %976 = vmatpush1.msra.mxu0 0.0
  %977 = vmatprep.subr.mxu0 0.0
  %978 = vmatpush1.msra.mxu0 0.0
  %979 = vmatprep.subr.mxu0 0.0
  %980 = vmatpush1.msra.mxu0 0.0
  %981 = vmatprep.subr.mxu0 0.0
  %982 = vmatpush1.msra.mxu0 0.0
  %983 = vmatprep.subr.mxu0 0.0
  %984 = vmatpush1.msra.mxu0 0.0
  %985 = vmatprep.subr.mxu0 0.0
  %986 = vmatpush1.msra.mxu0 0.0
  %987 = vmatprep.subr.mxu0 0.0
  %988 = vmatpush1.msra.mxu0 0.0
  %989 = vmatprep.subr.mxu0 0.0
  %990 = vmatpush1.msra.mxu0 0.0
  %991 = vmatprep.subr.mxu0 0.0
  %992 = vmatpush1.msra.mxu0 0.0
  %993 = vmatprep.subr.mxu0 0.0
  %994 = vmatpush1.msra.mxu0 0.0
  %995 = vmatprep.subr.mxu0 0.0
  %996 = vmatpush1.msra.mxu0 0.0
  %997 = vmatprep.subr.mxu0 0.0
  %998 = vmatpush1.msra.mxu0 0.0
  %999 = vmatprep.subr.mxu0 0.0
  %1000 = vmatpush1.msra.mxu0 0.0
  %1001 = vmatprep.subr.mxu0 0.0
  %1002 = vmatpush1.msra.mxu0 0.0
  %1003 = vmatprep.subr.mxu0 0.0
  %1004 = vmatpush1.msra.mxu0 0.0
  %1005 = vmatprep.subr.mxu0 0.0
  %1006 = vmatpush1.msra.mxu0 0.0
  %1007 = vmatprep.mubr.f32.mxu0 0.0
  %1008 = vmatmul.mubr.f32.gmra.mrb[0].mxu0 %v935
  %v1009 = vpop.f32.mrb[0].mxu0
  %v1010 = vadd.f32 0.0, %v1009
  %v1011 = vpop.f32.mrb[0].mxu0
  %1012 = vmatprep.mubr.f32.mxu0 0.0
  %1013 = vmatmul.mubr.f32.gmra.mrb[0].mxu0 %v937
  %v1014 = vpop.f32.mrb[0].mxu0
  %v1015 = vadd.f32 0.0, %v1014
  %v1016 = vpop.f32.mrb[0].mxu0
  %1017 = vmatprep.mubr.f32.mxu0 0.0
  %1018 = vmatmul.mubr.f32.gmra.mrb[0].mxu0 %v939
  %v1019 = vpop.f32.mrb[0].mxu0
  %v1020 = vadd.f32 0.0, %v1019
  %v1021 = vpop.f32.mrb[0].mxu0
  %1022 = vmatprep.mubr.f32.mxu0 0.0
  %1023 = vmatmul.mubr.f32.gmra.mrb[0].mxu0 %v941
  %v1024 = vpop.f32.mrb[0].mxu0
  %v1025 = vadd.f32 0.0, %v1024
  %v1026 = vpop.f32.mrb[0].mxu0
  %1027 = vdwg.mxu0
  %v1028 = vadd.f32 %v914, %v1010
  %v1029 = vadd.f32 %v915, %v1015
  %v1030 = vadd.f32 %v916, %v1020
  %v1031 = vadd.f32 %v917, %v1025
  %v1032 = vld [vmem:[%s2] sm:$0x1]
  %v1034 = vlaneseq
  %v1035 = vshrl.u32 %v1034, 7
  %v1036 = vsub.s32 0, %v1035
  %v1037 = vrot.slane %v1032, %v1036
  %v1039 = vadd.f32 %v1028, %v1037
  %v1040 = vadd.f32 %v1029, %v1037
  %v1041 = vadd.f32 %v1030, %v1037
  %v1042 = vadd.f32 %v1031, %v1037
  %1043 = vst [vmem:[%s3] sm:$0xff] %v1039
  %1044 = vst [vmem:[%s3 + $0x8] sm:$0xff] %v1040
  %1045 = vst [vmem:[%s3 + $0x10] sm:$0xff] %v1041
  %1046 = vst [vmem:[%s3 + $0x18] sm:$0xff] %v1042
  // Predicated region
  $region14: #{multi_branch_forward.1} parent=0 // pred_check
    _
  $region15: #{multi_branch_forward.1} parent=0 // pred_check_branch
    %1048 = sbr.rel (0) target = $region17
  $region16: #{multi_branch_forward.1} parent=0 // pred_region
    _
  $region17: #{multi_branch_forward.1} parent=0 // pred_fallthru
    _
  // Predicated region
  $region18: #{multi_branch_forward.1} parent=0 // pred_check
    _
  $region19: #{multi_branch_forward.1} parent=0 // pred_check_branch
    %1050 = sbr.rel (0) target = $region21
  $region20: #{multi_branch_forward.1} parent=0 // pred_region
    _
  $region21: #{multi_branch_forward.1} parent=0 // pred_fallthru
    _

</llo_original>
